<compile_context>
chip_gen: v7x
topology: tpu7x:2x2x1
jax: 0.10.0
libtpu: 0.0.40
codegen_flags: <defaults>
</compile_context>

<pallas_src>
import json
from collections import Counter
from functools import partial
from typing import NamedTuple

import numpy as np
import jax
import jax.numpy as jnp
from jax.experimental import pallas as pl
from jax.experimental.pallas import tpu as pltpu


_DTYPES = {
    "int8": jnp.int8,
    "bfloat16": jnp.bfloat16,
    "float32": jnp.float32,
    "int32": jnp.int32,
}


def _round_up(x, m):
    return ((x + m - 1) // m) * m


def _round_down(x, m):
    return (x // m) * m


class _Plan(NamedTuple):
    """Static launch geometry (hashable -> usable as a jit static argument)."""
    n: int              # real sample count
    k: int              # number of class-with-subtask columns
    c_all: int          # number of "all"-task classes
    ks2: int            # sublane-padded height of the stacked narrow stream (>= 2*k)
    n_pad: int          # padded sample count (= splits * steps * bn)
    ce: int             # lane-padded all-task width (c_all + 1 ones column, rounded to 128)
    bn: int             # sample tile
    steps: int          # sample tiles per core split
    splits: int         # leading (core) grid axis
    in_dtype: str
    acc_dtype: str
    core_parallel: bool


def _make_plan(n, k, c_all, in_dtype, acc_dtype, splits, core_parallel,
               block_n=2048, vmem_budget=10 * 1024 * 1024):
    itemsize = int(np.dtype(_DTYPES[in_dtype]).itemsize)
    sub_pack = max(8, 32 // itemsize)                 # native sublane packing of in_dtype
    ks2 = _round_up(max(2 * k, sub_pack), sub_pack)
    ce = _round_up(c_all + 1, 128)                    # +1 -> ones column for hits/truecnt

    # Sample tile: as large as possible (amortize the ~0.35us fixed per-step overhead on a
    # memory-bound kernel) while the double-buffered input blocks stay well under every
    # generation's default scoped-VMEM limit (v5e: 16 MiB, v7x physical: 64 MiB).
    bn_cap = vmem_budget // (2 * (ce + ks2) * itemsize)
    bn = max(128, min(block_n, _round_down(bn_cap, 128)))
    bn = min(bn, _round_up(max(n, 1), 128))

    if n < splits * bn:            # not enough rows to give every core a full tile
        splits = 1
    steps = -(-n // (bn * splits))
    n_pad = steps * splits * bn
    return _Plan(n=n, k=k, c_all=c_all, ks2=ks2, n_pad=n_pad, ce=ce, bn=bn,
                 steps=steps, splits=splits, in_dtype=in_dtype, acc_dtype=acc_dtype,
                 core_parallel=bool(core_parallel and splits > 1))


def _device_config():
    """Pick input dtype / accumulator / core split per TPU generation."""
    try:
        kind = jax.devices()[0].device_kind.lower()
    except Exception:
        kind = ""
    if "v7" in kind:
        # v7x: 2 TensorCores per chip; MXU has no integer path -> bf16 inputs, f32 acc.
        # TODO(synk): try float8_e4m3 inputs on v7x once fp8 matmul lowering is verified.
        return ("bfloat16", "float32", 2, True)
    if "v6" in kind or "v5e" in kind or "v5 lite" in kind or "v5lite" in kind:
        # v5e / v6e: native int8 MXU -> half the HBM bytes of bf16 and exact s32 counts.
        return ("int8", "int32", 1, False)
    return ("bfloat16", "float32", 1, False)


def _hidden_strat_kernel(nrw_ref, allt_ref, acc_ref):
    # Zero the resident accumulator at the start of each core's sample sweep.
    @pl.when(pl.program_id(1) == 0)
    def _():
        acc_ref[...] = jnp.zeros_like(acc_ref)

    # One MXU matmul per sample tile:
    #   rows [0, K)  x all-task columns -> subhits[k, c]
    #   rows [0, K)  x ones column      -> hits[k]
    #   rows [K, 2K) x ones column      -> truecnt[k]
    # (rows [K, 2K) x all-task columns are computed but unused — the MXU time is hidden
    #  under the HBM-bound DMA of the all-task label tile.)
    acc_ref[...] += jnp.dot(nrw_ref[...], allt_ref[...],
                            preferred_element_type=acc_ref.dtype)


@partial(jax.jit, static_argnames=("plan",))
def _hidden_strat_counts(logits, target, subtask_idx, allt_ext, *, plan):
    """Returns (subhits (K, C_all), hits (K,), truecnt (K,)) as exact counts."""
    p = plan
    in_dt = _DTYPES[p.in_dtype]
    acc_dt = _DTYPES[p.acc_dtype]

    # Only the K "class with subtask" columns are ever consumed.  Build the two 0/1
    # indicator rows ("pred AND true", "true") fused with the gather, then transpose so
    # samples land on lanes — no 128-wide lane padding of a K-wide stream.
    logits_sel = jnp.take(logits, subtask_idx, axis=1)            # (N, K)
    target_sel = jnp.take(target, subtask_idx, axis=1)            # (N, K)
    tgt = target_sel != 0
    pt = (logits_sel > 0) & tgt
    narrow = jnp.concatenate([pt, tgt], axis=1).astype(in_dt).T   # (2K, N), exact 0/1
    narrow = jnp.pad(narrow, ((0, p.ks2 - 2 * p.k), (0, p.n_pad - p.n)))

    steps = p.steps
    if p.splits > 1:
        lead_sem = pltpu.CORE_PARALLEL if p.core_parallel else pltpu.PARALLEL
    else:
        lead_sem = pltpu.ARBITRARY

    acc = pl.pallas_call(
        _hidden_strat_kernel,
        out_shape=jax.ShapeDtypeStruct((p.splits, p.ks2, p.ce), acc_dt),
        grid_spec=pltpu.PrefetchScalarGridSpec(
            num_scalar_prefetch=0,
            grid=(p.splits, p.steps),
            in_specs=[
                # stacked [pred&true ; true] indicators: K on sublanes, samples on lanes
                pl.BlockSpec((p.ks2, p.bn), lambda s, t: (0, s * steps + t)),
                # all-task labels (+ ones column): samples on sublanes, classes on lanes
                pl.BlockSpec((p.bn, p.ce), lambda s, t: (s * steps + t, 0)),
            ],
            out_specs=pl.BlockSpec((None, p.ks2, p.ce), lambda s, t: (s, 0, 0)),
        ),
        compiler_params=pltpu.CompilerParams(
            dimension_semantics=(lead_sem, pltpu.ARBITRARY)),
    )(narrow, allt_ext)

    acc = jnp.sum(acc, axis=0)             # combine per-core partials (integer-valued)
    subhits = acc[:p.k, :p.c_all]
    hits = acc[:p.k, p.c_all]
    truecnt = acc[p.k:2 * p.k, p.c_all]
    return subhits, hits, truecnt


def _prepare_allt(y_all_bool, plan):
    """Cast / ones-augment / pad the fixed all-task labels once (the dominant HBM stream)."""
    dt = _DTYPES[plan.in_dtype]
    allt = jnp.asarray(y_all_bool).astype(dt)               # (N, C_all) exact 0/1
    ones = jnp.ones((plan.n, 1), dt)                        # hits / truecnt column
    ext = jnp.concatenate([allt, ones], axis=1)
    ext = jnp.pad(ext, ((0, plan.n_pad - plan.n), (0, plan.ce - (plan.c_all + 1))))
    return jax.block_until_ready(ext)


class HiddenStratMetric:
    """JAX/Pallas port of HiddenStratMetric (sigmoid decision function).

    The dataset-driven parts of the original __init__ (eval(cfg.dataset), OmegaConf, tqdm)
    are replaced by explicitly supplied synthetic metadata.
    """

    def __init__(self, all_class_names, class_with_subtask_name,
                 class_with_subtask_pos, tree_hidden, y_true_all, num_classes,
                 decision_function="sigmoid"):
        assert decision_function is not None, "decision_function is None"
        if decision_function != "sigmoid":
            # TODO(synk): softmax/argmax decision path not implemented (the multi-label
            # nonzero() semantics of the reference loop only make sense for sigmoid).
            raise NotImplementedError(decision_function)
        self.decision_function = decision_function
        self.all_class_names = list(all_class_names)
        self.class_with_subtask_name = list(class_with_subtask_name)
        self.class_with_subtask_pos = list(class_with_subtask_pos)
        self.tree_hidden = {k: list(v) for k, v in tree_hidden.items()}
        self.num_classes = num_classes
        self.all_class_counter = Counter()
        self.class_predicted_counter = Counter()

        y_all = np.asarray(y_true_all)
        self._y_all_bool = y_all != 0
        self.y_true_all = jnp.asarray(y_all, jnp.float32)         # kept for API parity
        # y_true_all is fixed for the metric's lifetime — precompute its column counts.
        self._allcnt = self._y_all_bool.sum(axis=0).astype(np.int64)
        self._subtask_idx = jnp.asarray(self.class_with_subtask_pos, jnp.int32)
        self._col_of = {name: i for i, name in enumerate(self.all_class_names)}

        n, c_all = self._y_all_bool.shape
        k = len(self.class_with_subtask_pos)
        self._shape = (n, k, c_all)

        primary = _device_config()
        fallback = ("bfloat16", "float32", primary[2], False)     # proven-safe lowering
        self._configs = [primary] + ([fallback] if fallback != primary else [])
        self._prepared = {}
        # Eager prepare: the heavy cast/pad of y_true_all happens exactly once, here.
        self._get_prepared(self._configs[0])

    def _get_prepared(self, cfg):
        if cfg not in self._prepared:
            in_dtype, acc_dtype, splits, core_par = cfg
            plan = _make_plan(*self._shape, in_dtype=in_dtype, acc_dtype=acc_dtype,
                              splits=splits, core_parallel=core_par)
            self._prepared[cfg] = (plan, _prepare_allt(self._y_all_bool, plan))
        return self._prepared[cfg]

    def forward(self, input, target, **kwargs):
        logits = jnp.asarray(input["label"], jnp.float32)
        y_true = jnp.asarray(target["label"], jnp.float32)
        assert len(logits) == len(y_true) == self._shape[0]

        outs, last_err = None, None
        for cfg in self._configs:
            plan, allt_ext = self._get_prepared(cfg)
            try:
                outs = _hidden_strat_counts(logits, y_true, self._subtask_idx,
                                            allt_ext, plan=plan)
                outs = jax.block_until_ready(outs)
                break
            except Exception as err:   # narrow-dtype / CORE_PARALLEL lowering fallback
                last_err = err
                outs = None
        if outs is None:
            raise last_err

        subhits, hits, truecnt = (
            np.rint(np.asarray(jax.device_get(o), np.float64)).astype(np.int64)
            for o in outs)

        # all_class_counter: positives per "all"-task class (precomputed) + positives at
        # the class-with-subtask positions of the current task.
        for c, name in enumerate(self.all_class_names):
            cnt = int(self._allcnt[c])
            if cnt:
                self.all_class_counter[name] += cnt
        for k_i, name in enumerate(self.class_with_subtask_name):
            cnt = int(truecnt[k_i])
            if cnt:
                self.all_class_counter[name] += cnt

        # class_predicted_counter: parent hit counts + per-subclass hidden-strat hits.
        for k_i, name in enumerate(self.class_with_subtask_name):
            h = int(hits[k_i])
            if h:
                self.class_predicted_counter[name] += h
            for sub in self.tree_hidden[name]:
                sh = int(subhits[k_i, self._col_of[sub]])
                if sh:
                    self.class_predicted_counter[sub] += sh

        stats = {k: str(v) + "/" + str(self.all_class_counter[k])
                 for k, v in self.class_predicted_counter.items()}
        return {"hidden_strat_metric": json.dumps(
            {"{} ({})".format(k, stats[k]): ["{} ({})".format(v_, stats[v_]) for v_ in v]
             for k, v in self.tree_hidden.items()}, indent=4, sort_keys=True)}

    def get_required_keys(self):
        return ["label"]


def _reference_counters(logits, target, y_true_all, all_class_names,
                        subtask_names, subtask_pos, tree):
    """Direct numpy replica of the original per-sample PyTorch loop."""
    y_pred = np.asarray(logits) > 0
    y_true = np.asarray(target) != 0
    y_all = np.asarray(y_true_all) != 0
    all_cnt, pred_cnt = Counter(), Counter()
    for y_p, y_t, a_t in zip(y_pred, y_true, y_all):
        pos_names = [all_class_names[i] for i in np.nonzero(a_t)[0]]
        all_cnt.update(pos_names)
        p_pos = set(np.nonzero(y_p)[0].tolist())
        t_pos = set(np.nonzero(y_t)[0].tolist())
        true_sub = t_pos & set(subtask_pos)
        all_cnt.update([subtask_names[subtask_pos.index(p)] for p in true_sub])
        hidden = p_pos & true_sub
        for p in hidden:
            name = subtask_names[subtask_pos.index(p)]
            subs = set(tree[name]) & set(pos_names)
            pred_cnt.update(list(subs) + [name])
    return all_cnt, pred_cnt


if __name__ == "__main__":
    key = jax.random.PRNGKey(0)
    N, C, C_ALL, K = 16, 16, 32, 8

    all_class_names = ["sub_{}".format(i) for i in range(C_ALL)]
    subtask_names = ["parent_{}".format(j) for j in range(K)]
    subtask_pos = [2 * j for j in range(K)]
    tree_hidden = {subtask_names[j]: [all_class_names[2 * j], all_class_names[2 * j + 1]]
                   for j in range(K)}

    k1, k2, k3 = jax.random.split(key, 3)
    logits = jax.random.normal(k1, (N, C), jnp.float32)
    target = jax.random.bernoulli(k2, 0.5, (N, C)).astype(jnp.float32)
    y_true_all = jax.random.bernoulli(k3, 0.5, (N, C_ALL)).astype(jnp.float32)
    # Force sample 0 fully positive so every counter entry is non-zero
    # (matches the original code's assumption that stats[k] always exists).
    logits = logits.at[0].set(1.0)
    target = target.at[0].set(1.0)
    y_true_all = y_true_all.at[0].set(1.0)

    metric = HiddenStratMetric(
        all_class_names=all_class_names,
        class_with_subtask_name=subtask_names,
        class_with_subtask_pos=subtask_pos,
        tree_hidden=tree_hidden,
        y_true_all=y_true_all,
        num_classes=C,
        decision_function="sigmoid",
    )
    result = metric.forward({"label": logits}, {"label": target})
    assert isinstance(result["hidden_strat_metric"], str)

    # Verify kernel-derived counters against a direct replica of the original loop.
    ref_all, ref_pred = _reference_counters(
        logits, target, y_true_all, all_class_names, subtask_names,
        subtask_pos, tree_hidden)
    assert dict(ref_all) == dict(metric.all_class_counter), (ref_all, metric.all_class_counter)
    assert dict(ref_pred) == dict(metric.class_predicted_counter), (ref_pred, metric.class_predicted_counter)

    print("KERNEL_OK")
</pallas_src>

<mosaic_0001>
module attributes {stable_mosaic.version = 11 : i64} {
  func.func @_hidden_strat_kernel(%arg0: i32, %arg1: i32, %arg2: memref<16x128xbf16, #tpu.memory_space<vmem>>, %arg3: memref<128x128xbf16, #tpu.memory_space<vmem>>, %arg4: memref<1x16x128xf32, #tpu.memory_space<vmem>>) attributes {dimension_semantics = [#tpu.dimension_semantics<arbitrary>, #tpu.dimension_semantics<arbitrary>], iteration_bounds = array<i64: 1, 1>, scalar_prefetch = 0 : i64, scratch_operands = 0 : i64, tpu.core_type = #tpu.core_type<tc>, window_params = [{transform_indices = @transform_0, window_bounds = array<i64: 16, 128>}, {transform_indices = @transform_1, window_bounds = array<i64: 128, 128>}, {transform_indices = @transform_2, window_bounds = array<i64: 1, 16, 128>}]} {
    %c0_i32 = arith.constant 0 : i32
    %0 = arith.cmpi eq, %arg1, %c0_i32 : i32
    %1 = arith.extui %0 : i1 to i32
    %c0_i32_0 = arith.constant 0 : i32
    %2 = arith.cmpi ne, %1, %c0_i32_0 : i32
    scf.if %2 {
      %cst_10 = arith.constant 0.000000e+00 : f32
      %12 = vector.broadcast %cst_10 : f32 to vector<16x128xf32>
      %c0_11 = arith.constant 0 : index
      %c0_12 = arith.constant 0 : index
      %c0_13 = arith.constant 0 : index
      %13 = vector.load %arg4[%c0_11, %c0_12, %c0_13] : memref<1x16x128xf32, #tpu.memory_space<vmem>>, vector<1x16x128xf32>
      %14 = vector.shape_cast %13 : vector<1x16x128xf32> to vector<16x128xf32>
      %15 = vector.shape_cast %12 : vector<16x128xf32> to vector<1x16x128xf32>
      tpu.vector_store %arg4[%c0_11, %c0_12, %c0_13], %15 {strides = array<i32>} : memref<1x16x128xf32, #tpu.memory_space<vmem>>, vector<1x16x128xf32>,
    } else {
    }
    %c0 = arith.constant 0 : index
    %c0_1 = arith.constant 0 : index
    %c0_2 = arith.constant 0 : index
    %3 = vector.load %arg4[%c0, %c0_1, %c0_2] : memref<1x16x128xf32, #tpu.memory_space<vmem>>, vector<1x16x128xf32>
    %4 = vector.shape_cast %3 : vector<1x16x128xf32> to vector<16x128xf32>
    %c0_3 = arith.constant 0 : index
    %c0_4 = arith.constant 0 : index
    %5 = vector.load %arg2[%c0_3, %c0_4] : memref<16x128xbf16, #tpu.memory_space<vmem>>, vector<16x128xbf16>
    %c0_5 = arith.constant 0 : index
    %c0_6 = arith.constant 0 : index
    %6 = vector.load %arg3[%c0_5, %c0_6] : memref<128x128xbf16, #tpu.memory_space<vmem>>, vector<128x128xbf16>
    %cst = arith.constant dense<0.000000e+00> : vector<16x128xf32>
    %7 = tpu.matmul %5, %6, %cst {dimension_numbers = #tpu.dot_dimension_numbers<[1], [0], [0], [1], [0, 0, 1, 1], [], []>} : vector<16x128xbf16>, vector<128x128xbf16>, vector<16x128xf32> -> vector<16x128xf32>
    %8 = arith.addf %4, %7 : vector<16x128xf32>
    %c0_7 = arith.constant 0 : index
    %c0_8 = arith.constant 0 : index
    %c0_9 = arith.constant 0 : index
    %9 = vector.load %arg4[%c0_7, %c0_8, %c0_9] : memref<1x16x128xf32, #tpu.memory_space<vmem>>, vector<1x16x128xf32>
    %10 = vector.shape_cast %9 : vector<1x16x128xf32> to vector<16x128xf32>
    %11 = vector.shape_cast %8 : vector<16x128xf32> to vector<1x16x128xf32>
    tpu.vector_store %arg4[%c0_7, %c0_8, %c0_9], %11 {strides = array<i32>} : memref<1x16x128xf32, #tpu.memory_space<vmem>>, vector<1x16x128xf32>,
    return
  }
  func.func @transform_0(%arg0: i32, %arg1: i32) -> (i32, i32) {
    %c1_i32 = arith.constant 1 : i32
    %0 = arith.muli %arg0, %c1_i32 : i32
    %1 = arith.addi %0, %arg1 : i32
    %c0_i32 = arith.constant 0 : i32
    %c0_i32_0 = arith.constant 0 : i32
    return %c0_i32, %1 : i32, i32
  }
  func.func @transform_1(%arg0: i32, %arg1: i32) -> (i32, i32) {
    %c1_i32 = arith.constant 1 : i32
    %0 = arith.muli %arg0, %c1_i32 : i32
    %1 = arith.addi %0, %arg1 : i32
    %c0_i32 = arith.constant 0 : i32
    %c0_i32_0 = arith.constant 0 : i32
    return %1, %c0_i32 : i32, i32
  }
  func.func @transform_2(%arg0: i32, %arg1: i32) -> (i32, i32, i32) {
    %c0_i32 = arith.constant 0 : i32
    %c0_i32_0 = arith.constant 0 : i32
    %c0_i32_1 = arith.constant 0 : i32
    return %arg0, %c0_i32, %c0_i32_0 : i32, i32, i32
  }
}

</mosaic_0001>

<llo_original>
// kernel: _hidden_strat_counts.1
$region0: #{_hidden_strat_counts.1}
  #allocation0 [shape = 'u32[]', space=smem, size = 0x4, offset = 0x4, fixed_abs, tag = 'smem constant byte address 0x4 - core index']
  #allocation1 [shape = 'u32[144,128]{1,0:T(1,128)}', space=vmem, size = 0x12000, scoped, tag = 'internal scratch']
  %s0 = inlined_call_operand.vmem [shape: bf16[16,128], index: 0, kind: input, shape index: {}]
  %s1 = inlined_call_operand.vmem [shape: bf16[128,128], index: 1, kind: input, shape index: {}]
  %s2 = inlined_call_operand.vmem [shape: f32[1,16,128], index: 2, kind: output, shape index: {}]
  %s3 = sld [smem:[#allocation0]]
  $region22: #{_hidden_strat_counts.1} parent=0
    _
  %s5 = ssub.s32 1, %s3
  %s6 = scalar_select 0, %s5, %s3
  // Predicated region
  $region2: #{_hidden_strat_counts.1} parent=0 // pred_check
    _
  $region3: #{_hidden_strat_counts.1} parent=0 // pred_check_branch
    %8 = sbr.rel (0) target = $region5
  $region4: #{_hidden_strat_counts.1} parent=0 // pred_region
    %s9 = sadd.s32 0, 0
    %p10 = scmp.lt.s32.totalorder %s9, 0
    %s11 = scalar_select %p10, %s9, 0
    %s12 = smul.addr %s11, 4
    %s13 = scalar_lea.vmem %s0, %s12
    %s14 = sadd.s32 0, 0
  $region5: #{_hidden_strat_counts.1} parent=0 // pred_fallthru
    _
  // Predicated region
  $region6: #{_hidden_strat_counts.1} parent=0 // pred_check
    _
  $region7: #{_hidden_strat_counts.1} parent=0 // pred_check_branch
    %16 = sbr.rel (0) target = $region9
  $region8: #{_hidden_strat_counts.1} parent=0 // pred_region
    %s17 = sadd.s32 0, 0
    %s18 = smul.u32 16, %s17
    %p19 = scmp.lt.s32.totalorder %s18, 15
    %s20 = scalar_select %p19, %s18, 15
    %s21 = smul.addr %s20, 4
    %s22 = scalar_lea.vmem %s1, %s21
    %s23 = sadd.s32 0, 0
    %s24 = smul.u32 16, %s23
  $region9: #{_hidden_strat_counts.1} parent=0 // pred_fallthru
    _
  %s25 = sadd.s32 0, 0
  %p26 = scmp.lt.s32.totalorder %s25, 0
  %s27 = scalar_select %p26, %s25, 0
  %s28 = smul.addr %s27, 4
  %s29 = scalar_lea.vmem %s0, %s28
  %s30 = sadd.s32 0, 0
  %s31 = smul.u32 16, %s30
  %p32 = scmp.lt.s32.totalorder %s31, 15
  %s33 = scalar_select %p32, %s31, 15
  %s34 = smul.addr %s33, 4
  %s35 = scalar_lea.vmem %s1, %s34
  %s36 = sadd.s32 0, 0
  %p37 = scmp.lt.s32.totalorder %s36, 0
  %s38 = scalar_select %p37, %s36, 0
  %s39 = smul.addr %s38, 4
  %s40 = scalar_lea.vmem %s0, %s39
  %s41 = sadd.s32 0, 0
  %s42 = sadd.s32 0, 0
  %s43 = smul.u32 16, %s42
  %p44 = scmp.lt.s32.totalorder %s43, 15
  %s45 = scalar_select %p44, %s43, 15
  %s46 = smul.addr %s45, 4
  %s47 = scalar_lea.vmem %s1, %s46
  %s48 = sadd.s32 0, 0
  %s49 = smul.u32 16, %s48
  %p51 = scmp.eq.s32.totalorder 0, 0
  // Predicated region
  $region10: #{_hidden_strat_counts.1} parent=0 // pred_check
    %p52 = pneg %p51
  $region11: #{_hidden_strat_counts.1} parent=0 // pred_check_branch
    %54 = sbr.rel (%p52) target = $region13
  $region12: #{_hidden_strat_counts.1} parent=0 // pred_region
    %55 = vst [vmem:[%s2] sm:$0xff] 0.0
    %56 = vst [vmem:[%s2 + $0x8] sm:$0xff] 0.0
  $region13: #{_hidden_strat_counts.1} parent=0 // pred_fallthru
    _
  %v57 = vld [vmem:[%s2] sm:$0xff]
  %v58 = vld [vmem:[%s2 + $0x8] sm:$0xff]
  %v59 = vld [vmem:[%s40] sm:$0xf]
  %v60 = vld [vmem:[%s40 + $0x4] sm:$0xf]
  %v61 = vld [vmem:[%s47] sm:$0xf]
  %v62 = vld [vmem:[%s47 + $0x4] sm:$0xf]
  %v63 = vld [vmem:[%s47 + $0x8] sm:$0xf]
  %v64 = vld [vmem:[%s47 + $0xc] sm:$0xf]
  %v65 = vld [vmem:[%s47 + $0x10] sm:$0xf]
  %v66 = vld [vmem:[%s47 + $0x14] sm:$0xf]
  %v67 = vld [vmem:[%s47 + $0x18] sm:$0xf]
  %v68 = vld [vmem:[%s47 + $0x1c] sm:$0xf]
  %v69 = vld [vmem:[%s47 + $0x20] sm:$0xf]
  %v70 = vld [vmem:[%s47 + $0x24] sm:$0xf]
  %v71 = vld [vmem:[%s47 + $0x28] sm:$0xf]
  %v72 = vld [vmem:[%s47 + $0x2c] sm:$0xf]
  %v73 = vld [vmem:[%s47 + $0x30] sm:$0xf]
  %v74 = vld [vmem:[%s47 + $0x34] sm:$0xf]
  %v75 = vld [vmem:[%s47 + $0x38] sm:$0xf]
  %v76 = vld [vmem:[%s47 + $0x3c] sm:$0xf]
  %v79 = vunpack.c.l.b16 %v59
  %v80 = vunpack.c.l.b16 %v60
  %v81 = vpack.c.b16 %v80, %v79
  %v99 = vunpack.c.l.b16 %v61
  %v100 = vunpack.c.l.b16 %v62
  %v101 = vunpack.c.l.b16 %v63
  %v102 = vunpack.c.l.b16 %v64
  %v103 = vunpack.c.l.b16 %v65
  %v104 = vunpack.c.l.b16 %v66
  %v105 = vunpack.c.l.b16 %v67
  %v106 = vunpack.c.l.b16 %v68
  %v107 = vunpack.c.l.b16 %v69
  %v108 = vunpack.c.l.b16 %v70
  %v109 = vunpack.c.l.b16 %v71
  %v110 = vunpack.c.l.b16 %v72
  %v111 = vunpack.c.l.b16 %v73
  %v112 = vunpack.c.l.b16 %v74
  %v113 = vunpack.c.l.b16 %v75
  %v114 = vunpack.c.l.b16 %v76
  %v115 = vpack.c.b16 %v100, %v99
  %v116 = vpack.c.b16 %v102, %v101
  %v117 = vpack.c.b16 %v104, %v103
  %v118 = vpack.c.b16 %v106, %v105
  %v119 = vpack.c.b16 %v108, %v107
  %v120 = vpack.c.b16 %v110, %v109
  %v121 = vpack.c.b16 %v112, %v111
  %v122 = vpack.c.b16 %v114, %v113
  %131 = vmatprep.subr.bf16.mxu0 0
  %132 = vmatpush1.bf16.msra.mxu0 %v115
  %133 = vmatprep.subr.bf16.mxu0 0
  %134 = vmatpush1.bf16.msra.mxu0 %v116
  %135 = vmatprep.subr.bf16.mxu0 0
  %136 = vmatpush1.bf16.msra.mxu0 %v117
  %137 = vmatprep.subr.bf16.mxu0 0
  %138 = vmatpush1.bf16.msra.mxu0 %v118
  %139 = vmatprep.subr.bf16.mxu0 0
  %140 = vmatpush1.bf16.msra.mxu0 %v119
  %141 = vmatprep.subr.bf16.mxu0 0
  %142 = vmatpush1.bf16.msra.mxu0 %v120
  %143 = vmatprep.subr.bf16.mxu0 0
  %144 = vmatpush1.bf16.msra.mxu0 %v121
  %145 = vmatprep.subr.bf16.mxu0 0
  %146 = vmatpush1.bf16.msra.mxu0 %v122
  %147 = vmatprep.subr.bf16.mxu0 0
  %148 = vmatpush1.bf16.msra.mxu0 0
  %149 = vmatprep.subr.bf16.mxu0 0
  %150 = vmatpush1.bf16.msra.mxu0 0
  %151 = vmatprep.subr.bf16.mxu0 0
  %152 = vmatpush1.bf16.msra.mxu0 0
  %153 = vmatprep.subr.bf16.mxu0 0
  %154 = vmatpush1.bf16.msra.mxu0 0
  %155 = vmatprep.subr.bf16.mxu0 0
  %156 = vmatpush1.bf16.msra.mxu0 0
  %157 = vmatprep.subr.bf16.mxu0 0
  %158 = vmatpush1.bf16.msra.mxu0 0
  %159 = vmatprep.subr.bf16.mxu0 0
  %160 = vmatpush1.bf16.msra.mxu0 0
  %161 = vmatprep.subr.bf16.mxu0 0
  %162 = vmatpush1.bf16.msra.mxu0 0
  %163 = vmatprep.mubr.bf16.mxu0 0
  %164 = vmatmul.mubr.bf16.gmra.mrb[0].mxu0 %v81
  %v165 = vpop.f32.mrb[0].mxu0
  %v166 = vadd.f32 0.0, %v165
  %v167 = vpop.f32.mrb[0].mxu0
  %v168 = vpop.f32.mrb[0].mxu0
  %v169 = vadd.f32 0.0, %v168
  %v170 = vpop.f32.mrb[0].mxu0
  %171 = vdwg.mxu0
  %v172 = vadd.f32 %v57, %v166
  %v173 = vadd.f32 %v58, %v169
  %174 = vst [vmem:[%s2] sm:$0xff] %v172
  %175 = vst [vmem:[%s2 + $0x8] sm:$0xff] %v173
  // Predicated region
  $region14: #{_hidden_strat_counts.1} parent=0 // pred_check
    _
  $region15: #{_hidden_strat_counts.1} parent=0 // pred_check_branch
    %177 = sbr.rel (0) target = $region17
  $region16: #{_hidden_strat_counts.1} parent=0 // pred_region
    _
  $region17: #{_hidden_strat_counts.1} parent=0 // pred_fallthru
    _
  // Predicated region
  $region18: #{_hidden_strat_counts.1} parent=0 // pred_check
    _
  $region19: #{_hidden_strat_counts.1} parent=0 // pred_check_branch
    %179 = sbr.rel (0) target = $region21
  $region20: #{_hidden_strat_counts.1} parent=0 // pred_region
    _
  $region21: #{_hidden_strat_counts.1} parent=0 // pred_fallthru
    _

</llo_original>
